<compile_context>
chip_gen: v6e
topology: v6e:2x2x1
jax: 0.10.0
libtpu: 0.0.40
codegen_flags: <defaults>
</compile_context>

<pallas_src>
import math

import jax
import jax.numpy as jnp
from jax.experimental import pallas as pl
from jax.experimental.pallas import tpu as pltpu

_LANE = 128


def _disc_kernel(bias_ref, v1_ref, v2_ref,
                 h1_ref, h2_ref, h3_ref, h4_ref, out_ref):
    bias = bias_ref[0]                                     # scalar (SMEM)

    v1 = v1_ref[...][:, None, :]                           # (B, 1, n_h) f32
    v2 = v2_ref[...][:, None, :]                           # (B, 1, n_h) f32

    def score(h_ref, v):
        # Upcast per tile (keeps bf16 in HBM/VMEM; f32 math on the VPU -- needed on v5e).
        h = h_ref[...].astype(jnp.float32)                 # (B, T, n_h)
        return jnp.sum(h * v, axis=-1)                     # (B, T)

    # torch order: cat([f(h2,c1), f(h1,c2), f(h4,c1), f(h3,c2)], dim=1)
    s1 = score(h2_ref, v1)
    s2 = score(h1_ref, v2)
    s3 = score(h4_ref, v1)
    s4 = score(h3_ref, v2)

    # One lane-dense store per tile: (B, 4, T) -> (4B, T), row index b*4 + s.
    blk = jnp.stack([s1, s2, s3, s4], axis=1) + bias
    out_ref[...] = blk.reshape(out_ref.shape).astype(out_ref.dtype)


def _vmem_capacity_bytes():
    """Physical VMEM per TensorCore; conservative 64 MiB (v7x) if the query fails."""
    try:
        cap = int(getattr(pltpu.get_tpu_info(), "vmem_capacity_bytes", 0))
        if cap > 0:
            return cap
    except Exception:
        pass
    return 64 * 1024 * 1024


def _round_up(x, m):
    return ((x + m - 1) // m) * m


def _choose_n_tile(N, B, n_h, h_itemsize, vmem_cap):
    """Node-tile size from a VMEM budget, lane-padding aware, >= 2 grid steps."""
    if N <= _LANE:
        return N                                           # single full block

    lane_nh = _round_up(n_h, _LANE)                        # VMEM lane padding of features
    bytes_per_node = 4 * 2 * B * lane_nh * h_itemsize      # 4 h tensors x 2 buffers
    bytes_per_node += 2 * (4 * B) * 4                      # (4B, n_tile) f32 out, x2 buffers
    budget = int(0.60 * vmem_cap)                          # leave headroom for scratch

    t = budget // max(bytes_per_node, 1)
    t = min(t, 16384)                                      # sanity cap on block width
    # Keep >= 2 grid steps so the "parallel" axis can shard across v7x's 2 TensorCores.
    t = min(t, _round_up(pl.cdiv(N, 2), _LANE))
    return max(_LANE, (t // _LANE) * _LANE)


def discriminator_forward(W, bias, c1, c2, h1, h2, h3, h4, *, n_tile=None):
    """W: (n_h, n_h), bias: (1,), c*: (B, n_h), h*: (B, N, n_h) -> logits (B, 4N).

    h1..h4 are streamed at their native dtype (pass bf16 to halve HBM traffic);
    all arithmetic is f32 inside the kernel.
    """
    B, N, n_h = h1.shape

    # Hoist the tiny context projections out of the kernel (they would re-run per tile
    # and are >98% padding on the MXU).
    Wf = W.astype(jnp.float32)
    v1 = jnp.dot(c1.astype(jnp.float32), Wf.T)             # (B, n_h) f32
    v2 = jnp.dot(c2.astype(jnp.float32), Wf.T)             # (B, n_h) f32
    bias = bias.astype(jnp.float32)

    vmem_cap = _vmem_capacity_bytes()
    if n_tile is None:
        n_tile = _choose_n_tile(N, B, n_h, jnp.dtype(h1.dtype).itemsize, vmem_cap)
    n_tile = min(n_tile, N)
    if n_tile < N:
        assert n_tile % _LANE == 0, "n_tile must be a multiple of 128 when tiling N"

    grid = (pl.cdiv(N, n_tile),)

    h_spec = pl.BlockSpec((B, n_tile, n_h), lambda i: (0, i, 0))
    v_spec = pl.BlockSpec((B, n_h), lambda i: (0, 0))

    out = pl.pallas_call(
        _disc_kernel,
        out_shape=jax.ShapeDtypeStruct((B * 4, N), jnp.float32),
        grid=grid,
        in_specs=[
            pl.BlockSpec(memory_space=pltpu.SMEM),          # bias (scalar)
            v_spec, v_spec,                                 # v1, v2 (f32)
            h_spec, h_spec, h_spec, h_spec,                 # h1..h4 (native dtype)
        ],
        out_specs=pl.BlockSpec((B * 4, n_tile), lambda i: (0, i)),
        compiler_params=pltpu.CompilerParams(
            dimension_semantics=("parallel",),              # megacore-shard node tiles
            vmem_limit_bytes=int(0.85 * vmem_cap),          # below physical on every gen
        ),
    )(bias, v1, v2, h1, h2, h3, h4)

    # (4B, N) with row b*4+s -> (B, 4, N) -> (B, 4N): free row-major reshapes,
    # identical to torch.cat([sc_1, sc_2, sc_3, sc_4], dim=1).
    return out.reshape(B, 4, N).reshape(B, 4 * N)


def _reference(W, bias, c1, c2, h1, h2, h3, h4):
    # Pure-JAX reference mirroring torch.nn.Bilinear with the broadcast context.
    def bilinear(h, c):
        v = jnp.einsum('ij,bj->bi', W.astype(jnp.float32), c.astype(jnp.float32))
        return jnp.einsum('bni,bi->bn', h.astype(jnp.float32), v) + bias[0]
    sc1 = bilinear(h2, c1)
    sc2 = bilinear(h1, c2)
    sc3 = bilinear(h4, c1)
    sc4 = bilinear(h3, c2)
    return jnp.concatenate([sc1, sc2, sc3, sc4], axis=1)


def _make_inputs(key, B, N, n_h, h_dtype=jnp.float32):
    kW, kc1, kc2, kh1, kh2, kh3, kh4 = jax.random.split(key, 7)
    # Deterministic xavier_uniform init of the Bilinear weight (torch shape (1, n_h, n_h)):
    fan_in = n_h * n_h          # size(1) * receptive_field
    fan_out = n_h               # size(0) * receptive_field
    bound = math.sqrt(6.0 / (fan_in + fan_out))
    W = jax.random.uniform(kW, (n_h, n_h), jnp.float32, minval=-bound, maxval=bound)
    bias = jnp.zeros((1,), jnp.float32)                     # bias.data.fill_(0.0)
    c1 = jax.random.normal(kc1, (B, n_h), jnp.float32)
    c2 = jax.random.normal(kc2, (B, n_h), jnp.float32)
    hs = [jax.random.normal(k, (B, N, n_h), jnp.float32).astype(h_dtype)
          for k in (kh1, kh2, kh3, kh4)]
    return (W, bias, c1, c2, *hs)


if __name__ == "__main__":
    key = jax.random.PRNGKey(0)
    k1, k2, k3 = jax.random.split(key, 3)

    # TODO(synk): s_bias1/s_bias2 args of forward() are unused in the original module; omitted.

    # 1) Small shape, single block (grid=(1,)).
    B, N, n_h = 2, 8, 32
    args = _make_inputs(k1, B, N, n_h)
    logits = jax.block_until_ready(discriminator_forward(*args))
    ref = _reference(*args)
    assert logits.shape == (B, 4 * N)
    assert jnp.allclose(logits, ref, atol=1e-4, rtol=1e-4)

    # 2) f32, auto tile selection -> >= 2 grid steps (pipelined / megacore path).
    B, N, n_h = 2, 256, 32
    args = _make_inputs(k2, B, N, n_h)
    logits = jax.block_until_ready(discriminator_forward(*args))
    ref = _reference(*args)
    assert logits.shape == (B, 4 * N)
    assert jnp.allclose(logits, ref, atol=1e-4, rtol=1e-4)

    # 3) bf16 node embeddings streamed at native width (f32 accumulation in-kernel).
    B, N, n_h = 2, 256, 32
    args = _make_inputs(k3, B, N, n_h, h_dtype=jnp.bfloat16)
    logits = jax.block_until_ready(discriminator_forward(*args))
    ref = _reference(*args)
    assert logits.shape == (B, 4 * N)
    assert jnp.allclose(logits, ref, atol=1e-2, rtol=1e-2)

    print("KERNEL_OK")
</pallas_src>

<mosaic_0001>
module attributes {stable_mosaic.version = 11 : i64} {
  func.func @_disc_kernel(%arg0: i32, %arg1: memref<1xf32, #tpu.memory_space<smem>>, %arg2: memref<2x32xf32, #tpu.memory_space<vmem>>, %arg3: memref<2x32xf32, #tpu.memory_space<vmem>>, %arg4: memref<2x8x32xf32, #tpu.memory_space<vmem>>, %arg5: memref<2x8x32xf32, #tpu.memory_space<vmem>>, %arg6: memref<2x8x32xf32, #tpu.memory_space<vmem>>, %arg7: memref<2x8x32xf32, #tpu.memory_space<vmem>>, %arg8: memref<8x8xf32, #tpu.memory_space<vmem>>) attributes {dimension_semantics = [#tpu.dimension_semantics<parallel>], iteration_bounds = array<i64: 1>, scalar_prefetch = 0 : i64, scratch_operands = 0 : i64, tpu.core_type = #tpu.core_type<tc>, window_params = [{transform_indices = @transform_0, window_bounds = array<i64: 1>}, {pipeline_mode = #tpu.pipeline_mode<synchronous>, transform_indices = @transform_1, window_bounds = array<i64: 2, 32>}, {pipeline_mode = #tpu.pipeline_mode<synchronous>, transform_indices = @transform_2, window_bounds = array<i64: 2, 32>}, {transform_indices = @transform_3, window_bounds = array<i64: 2, 8, 32>}, {transform_indices = @transform_4, window_bounds = array<i64: 2, 8, 32>}, {transform_indices = @transform_5, window_bounds = array<i64: 2, 8, 32>}, {transform_indices = @transform_6, window_bounds = array<i64: 2, 8, 32>}, {transform_indices = @transform_7, window_bounds = array<i64: 8, 8>}]} {
    %c0 = arith.constant 0 : index
    %0 = memref.load %arg1[%c0] : memref<1xf32, #tpu.memory_space<smem>>
    %c0_0 = arith.constant 0 : index
    %c0_1 = arith.constant 0 : index
    %1 = vector.load %arg2[%c0_0, %c0_1] : memref<2x32xf32, #tpu.memory_space<vmem>>, vector<2x32xf32>
    %2 = vector.shape_cast %1 : vector<2x32xf32> to vector<2x1x32xf32>
    %c0_2 = arith.constant 0 : index
    %c0_3 = arith.constant 0 : index
    %3 = vector.load %arg3[%c0_2, %c0_3] : memref<2x32xf32, #tpu.memory_space<vmem>>, vector<2x32xf32>
    %4 = vector.shape_cast %3 : vector<2x32xf32> to vector<2x1x32xf32>
    %c0_4 = arith.constant 0 : index
    %c0_5 = arith.constant 0 : index
    %c0_6 = arith.constant 0 : index
    %5 = vector.load %arg5[%c0_4, %c0_5, %c0_6] : memref<2x8x32xf32, #tpu.memory_space<vmem>>, vector<2x8x32xf32>
    %6 = vector.broadcast %2 : vector<2x1x32xf32> to vector<2x8x32xf32>
    %7 = arith.mulf %5, %6 : vector<2x8x32xf32>
    %cst = arith.constant dense<0.000000e+00> : vector<2x8xf32>
    %8 = vector.multi_reduction <add>, %7, %cst [2] : vector<2x8x32xf32> to vector<2x8xf32>
    %c0_7 = arith.constant 0 : index
    %c0_8 = arith.constant 0 : index
    %c0_9 = arith.constant 0 : index
    %9 = vector.load %arg4[%c0_7, %c0_8, %c0_9] : memref<2x8x32xf32, #tpu.memory_space<vmem>>, vector<2x8x32xf32>
    %10 = vector.broadcast %4 : vector<2x1x32xf32> to vector<2x8x32xf32>
    %11 = arith.mulf %9, %10 : vector<2x8x32xf32>
    %cst_10 = arith.constant dense<0.000000e+00> : vector<2x8xf32>
    %12 = vector.multi_reduction <add>, %11, %cst_10 [2] : vector<2x8x32xf32> to vector<2x8xf32>
    %c0_11 = arith.constant 0 : index
    %c0_12 = arith.constant 0 : index
    %c0_13 = arith.constant 0 : index
    %13 = vector.load %arg7[%c0_11, %c0_12, %c0_13] : memref<2x8x32xf32, #tpu.memory_space<vmem>>, vector<2x8x32xf32>
    %14 = vector.broadcast %2 : vector<2x1x32xf32> to vector<2x8x32xf32>
    %15 = arith.mulf %13, %14 : vector<2x8x32xf32>
    %cst_14 = arith.constant dense<0.000000e+00> : vector<2x8xf32>
    %16 = vector.multi_reduction <add>, %15, %cst_14 [2] : vector<2x8x32xf32> to vector<2x8xf32>
    %c0_15 = arith.constant 0 : index
    %c0_16 = arith.constant 0 : index
    %c0_17 = arith.constant 0 : index
    %17 = vector.load %arg6[%c0_15, %c0_16, %c0_17] : memref<2x8x32xf32, #tpu.memory_space<vmem>>, vector<2x8x32xf32>
    %18 = vector.broadcast %4 : vector<2x1x32xf32> to vector<2x8x32xf32>
    %19 = arith.mulf %17, %18 : vector<2x8x32xf32>
    %cst_18 = arith.constant dense<0.000000e+00> : vector<2x8xf32>
    %20 = vector.multi_reduction <add>, %19, %cst_18 [2] : vector<2x8x32xf32> to vector<2x8xf32>
    %21 = vector.shape_cast %8 : vector<2x8xf32> to vector<2x1x8xf32>
    %22 = vector.shape_cast %12 : vector<2x8xf32> to vector<2x1x8xf32>
    %23 = vector.shape_cast %16 : vector<2x8xf32> to vector<2x1x8xf32>
    %24 = vector.shape_cast %20 : vector<2x8xf32> to vector<2x1x8xf32>
    %25 = tpu.concatenate %21, %22, %23, %24 in 1 : vector<2x1x8xf32>, vector<2x1x8xf32>, vector<2x1x8xf32>, vector<2x1x8xf32> -> vector<2x4x8xf32>
    %26 = vector.broadcast %0 : f32 to vector<2x4x8xf32>
    %27 = arith.addf %25, %26 : vector<2x4x8xf32>
    %28 = vector.shape_cast %27 : vector<2x4x8xf32> to vector<8x8xf32>
    %c0_19 = arith.constant 0 : index
    %c0_20 = arith.constant 0 : index
    %29 = vector.load %arg8[%c0_19, %c0_20] : memref<8x8xf32, #tpu.memory_space<vmem>>, vector<8x8xf32>
    tpu.vector_store %arg8[%c0_19, %c0_20], %28 {strides = array<i32>} : memref<8x8xf32, #tpu.memory_space<vmem>>, vector<8x8xf32>,
    return
  }
  func.func @transform_0(%arg0: i32) -> i32 {
    %c0_i32 = arith.constant 0 : i32
    %c0_i32_0 = arith.constant 0 : i32
    return %c0_i32 : i32
  }
  func.func @transform_1(%arg0: i32) -> (i32, i32) {
    %c0_i32 = arith.constant 0 : i32
    %c0_i32_0 = arith.constant 0 : i32
    %c0_i32_1 = arith.constant 0 : i32
    return %c0_i32, %c0_i32_0 : i32, i32
  }
  func.func @transform_2(%arg0: i32) -> (i32, i32) {
    %c0_i32 = arith.constant 0 : i32
    %c0_i32_0 = arith.constant 0 : i32
    %c0_i32_1 = arith.constant 0 : i32
    return %c0_i32, %c0_i32_0 : i32, i32
  }
  func.func @transform_3(%arg0: i32) -> (i32, i32, i32) {
    %c0_i32 = arith.constant 0 : i32
    %c0_i32_0 = arith.constant 0 : i32
    %c0_i32_1 = arith.constant 0 : i32
    return %c0_i32, %arg0, %c0_i32_0 : i32, i32, i32
  }
  func.func @transform_4(%arg0: i32) -> (i32, i32, i32) {
    %c0_i32 = arith.constant 0 : i32
    %c0_i32_0 = arith.constant 0 : i32
    %c0_i32_1 = arith.constant 0 : i32
    return %c0_i32, %arg0, %c0_i32_0 : i32, i32, i32
  }
  func.func @transform_5(%arg0: i32) -> (i32, i32, i32) {
    %c0_i32 = arith.constant 0 : i32
    %c0_i32_0 = arith.constant 0 : i32
    %c0_i32_1 = arith.constant 0 : i32
    return %c0_i32, %arg0, %c0_i32_0 : i32, i32, i32
  }
  func.func @transform_6(%arg0: i32) -> (i32, i32, i32) {
    %c0_i32 = arith.constant 0 : i32
    %c0_i32_0 = arith.constant 0 : i32
    %c0_i32_1 = arith.constant 0 : i32
    return %c0_i32, %arg0, %c0_i32_0 : i32, i32, i32
  }
  func.func @transform_7(%arg0: i32) -> (i32, i32) {
    %c0_i32 = arith.constant 0 : i32
    %c0_i32_0 = arith.constant 0 : i32
    return %c0_i32, %arg0 : i32, i32
  }
}

</mosaic_0001>

<llo_original>
// kernel: tpu_custom_call.1
$region0: #{tpu_custom_call.1}
  #allocation0 [shape = 'u32[]', space=smem, size = 0x4, offset = 0x4, fixed_abs, tag = 'smem constant byte address 0x4 - core index']
  #allocation1 [shape = 'u32[144,128]{1,0:T(1,128)}', space=vmem, size = 0x12000, scoped, tag = 'internal scratch']
  #allocation2 [shape = 'f32[1]{0:T(128)S(6)}', space=smem, size = 0x200, scoped, tag = 'scoped memory for tpu_custom_call.1']
  %s0 = inlined_call_operand.<no memory space> [shape: f32[1], index: 0, kind: input, shape index: {}]
  %s1 = inlined_call_operand.vmem [shape: f32[2,32], index: 1, kind: input, shape index: {}]
  %s2 = inlined_call_operand.hbm [shape: f32[2,32], index: 2, kind: input, shape index: {}]
  %s3 = inlined_call_operand.hbm [shape: f32[2,8,32], index: 3, kind: input, shape index: {}]
  %s4 = inlined_call_operand.hbm [shape: f32[2,8,32], index: 4, kind: input, shape index: {}]
  %s5 = inlined_call_operand.hbm [shape: f32[2,8,32], index: 5, kind: input, shape index: {}]
  %s6 = inlined_call_operand.hbm [shape: f32[2,8,32], index: 6, kind: input, shape index: {}]
  %s7 = inlined_call_operand.hbm [shape: f32[8,8], index: 7, kind: output, shape index: {}]
  %s8 = sld [smem:[#allocation0]]
  $region58: #{tpu_custom_call.1} parent=0
    _
  %s10 = ssub.s32 1, %s8
  %s11 = scalar_select 0, %s10, %s8
  %12 = sst [smem:[#allocation2]] %s0
  $region1: #{tpu_custom_call.1} parent=0
    #allocation3 [shape = 'u8[1024]{0}', space=vmem, size = 0x400, scoped, tag = 'input window, operand 2, single buffered']
    #allocation4 [shape = 's32[1]{0}', space=sflag, size = 0x4, scoped, tag = 'scoped memory for tpu_custom_call.1']
    #allocation5 [shape = 's32[1]{0}', space=sflag, size = 0x4, scoped, tag = 'scoped memory for tpu_custom_call.1']
    #allocation6 [shape = 'u8[8192]{0}', space=vmem, size = 0x2000, scoped, tag = 'input window, operand 3, single buffered']
    #allocation7 [shape = 's32[1]{0}', space=sflag, size = 0x4, scoped, tag = 'scoped memory for tpu_custom_call.1']
    #allocation8 [shape = 'u8[8192]{0}', space=vmem, size = 0x2000, scoped, tag = 'input window, operand 4, single buffered']
    #allocation9 [shape = 'u8[8192]{0}', space=vmem, size = 0x2000, scoped, tag = 'input window, operand 5, single buffered']
    #allocation10 [shape = 's32[1]{0}', space=sflag, size = 0x4, scoped, tag = 'scoped memory for tpu_custom_call.1']
    #allocation11 [shape = 'u8[8192]{0}', space=vmem, size = 0x2000, scoped, tag = 'input window, operand 6, single buffered']
    #allocation12 [shape = 'u8[4096]{0}', space=vmem, size = 0x1000, scoped, tag = 'output window, operand 0, single buffered']
    %13 = vsyncpa [#allocation4], 0
    %14 = vsyncpa [#allocation7], 0
    %15 = vsyncpa [#allocation10], 0
    %16 = vsyncpa [#allocation5], 0
    // Predicated region
    $region2: #{tpu_custom_call.1} parent=1 // pred_check
      _
    $region3: #{tpu_custom_call.1} parent=1 // pred_check_branch
      %18 = sbr.rel (0) target = $region5
    $region4: #{tpu_custom_call.1} parent=1 // pred_region
      _
    $region5: #{tpu_custom_call.1} parent=1 // pred_fallthru
      _
    // Predicated region
    $region6: #{tpu_custom_call.1} parent=1 // pred_check
      _
    $region7: #{tpu_custom_call.1} parent=1 // pred_check_branch
      %20 = sbr.rel (0) target = $region9
    $region8: #{tpu_custom_call.1} parent=1 // pred_region
      _
    $region9: #{tpu_custom_call.1} parent=1 // pred_fallthru
      _
    // Predicated region
    $region10: #{tpu_custom_call.1} parent=1 // pred_check
      _
    $region11: #{tpu_custom_call.1} parent=1 // pred_check_branch
      %22 = sbr.rel (0) target = $region13
    $region12: #{tpu_custom_call.1} parent=1 // pred_region
      %s24 = ssub.s32 32, 32
      %25 = vsyncadd [#allocation4], %s24
      %s27 = sshll.u32 [#allocation3], 4
      %s28 = int_to_ptr.vmem [resolvable:$true] %s27
      %30 = dma.hbm_to_vmem [thread:$0]  %s2, 32, %s28, [#allocation4]
    $region13: #{tpu_custom_call.1} parent=1 // pred_fallthru
      _
    // Predicated region
    $region14: #{tpu_custom_call.1} parent=1 // pred_check
      _
    $region15: #{tpu_custom_call.1} parent=1 // pred_check_branch
      %32 = sbr.rel (0) target = $region17
    $region16: #{tpu_custom_call.1} parent=1 // pred_region
      %s34 = ssub.s32 256, 256
      %35 = vsyncadd [#allocation7], %s34
      %s36 = sshll.u32 [#allocation6], 4
      %s37 = int_to_ptr.vmem [resolvable:$true] %s36
      %42 = dma.hbm_to_vmem [thread:$0]  %s3, 256, %s37, [#allocation7], 128, 128, 8
    $region17: #{tpu_custom_call.1} parent=1 // pred_fallthru
      _
    // Predicated region
    $region18: #{tpu_custom_call.1} parent=1 // pred_check
      _
    $region19: #{tpu_custom_call.1} parent=1 // pred_check_branch
      %44 = sbr.rel (0) target = $region21
    $region20: #{tpu_custom_call.1} parent=1 // pred_region
      %s46 = ssub.s32 256, 256
      %47 = vsyncadd [#allocation7], %s46
      %s48 = sshll.u32 [#allocation8], 4
      %s49 = int_to_ptr.vmem [resolvable:$true] %s48
      %54 = dma.hbm_to_vmem [thread:$0]  %s4, 256, %s49, [#allocation7], 128, 128, 8
    $region21: #{tpu_custom_call.1} parent=1 // pred_fallthru
      _
    // Predicated region
    $region22: #{tpu_custom_call.1} parent=1 // pred_check
      _
    $region23: #{tpu_custom_call.1} parent=1 // pred_check_branch
      %56 = sbr.rel (0) target = $region25
    $region24: #{tpu_custom_call.1} parent=1 // pred_region
      %s58 = ssub.s32 256, 256
      %59 = vsyncadd [#allocation10], %s58
      %s60 = sshll.u32 [#allocation9], 4
      %s61 = int_to_ptr.vmem [resolvable:$true] %s60
      %66 = dma.hbm_to_vmem [thread:$0]  %s5, 256, %s61, [#allocation10], 128, 128, 8
    $region25: #{tpu_custom_call.1} parent=1 // pred_fallthru
      _
    // Predicated region
    $region26: #{tpu_custom_call.1} parent=1 // pred_check
      _
    $region27: #{tpu_custom_call.1} parent=1 // pred_check_branch
      %68 = sbr.rel (0) target = $region29
    $region28: #{tpu_custom_call.1} parent=1 // pred_region
      %s70 = ssub.s32 256, 256
      %71 = vsyncadd [#allocation10], %s70
      %s72 = sshll.u32 [#allocation11], 4
      %s73 = int_to_ptr.vmem [resolvable:$true] %s72
      %78 = dma.hbm_to_vmem [thread:$0]  %s6, 256, %s73, [#allocation10], 128, 128, 8
    $region29: #{tpu_custom_call.1} parent=1 // pred_fallthru
      _
    // Predicated region
    $region30: #{tpu_custom_call.1} parent=1 // pred_check
      _
    $region31: #{tpu_custom_call.1} parent=1 // pred_check_branch
      %80 = sbr.rel (0) target = $region33
    $region32: #{tpu_custom_call.1} parent=1 // pred_region
      %81 = dma.done [#allocation4], 32
    $region33: #{tpu_custom_call.1} parent=1 // pred_fallthru
      _
    // Predicated region
    $region34: #{tpu_custom_call.1} parent=1 // pred_check
      _
    $region35: #{tpu_custom_call.1} parent=1 // pred_check_branch
      %83 = sbr.rel (0) target = $region37
    $region36: #{tpu_custom_call.1} parent=1 // pred_region
      %84 = dma.done [#allocation7], 256
    $region37: #{tpu_custom_call.1} parent=1 // pred_fallthru
      _
    // Predicated region
    $region38: #{tpu_custom_call.1} parent=1 // pred_check
      _
    $region39: #{tpu_custom_call.1} parent=1 // pred_check_branch
      %86 = sbr.rel (0) target = $region41
    $region40: #{tpu_custom_call.1} parent=1 // pred_region
      %87 = dma.done [#allocation7], 256
    $region41: #{tpu_custom_call.1} parent=1 // pred_fallthru
      _
    // Predicated region
    $region42: #{tpu_custom_call.1} parent=1 // pred_check
      _
    $region43: #{tpu_custom_call.1} parent=1 // pred_check_branch
      %89 = sbr.rel (0) target = $region45
    $region44: #{tpu_custom_call.1} parent=1 // pred_region
      %90 = dma.done [#allocation10], 256
    $region45: #{tpu_custom_call.1} parent=1 // pred_fallthru
      _
    // Predicated region
    $region46: #{tpu_custom_call.1} parent=1 // pred_check
      _
    $region47: #{tpu_custom_call.1} parent=1 // pred_check_branch
      %92 = sbr.rel (0) target = $region49
    $region48: #{tpu_custom_call.1} parent=1 // pred_region
      %93 = dma.done [#allocation10], 256
    $region49: #{tpu_custom_call.1} parent=1 // pred_fallthru
      _
    %s94 = sld [smem:[#allocation2]]
    %v95 = vld [vmem:[%s1] sm:$0x3]
    %v98 = vunpack.c.l.s4 1966171168
    %v99 = vunpack.c.0.s8 %v98
    %v100 = vlaneseq
    %v101 = vshrl.u32 %v100, 7
    %v102 = vsub.s32 %v99, %v101
    %v103 = vrot.slane %v95, %v102
    %v104 = vcombine.high %v103, %v103
    %v106 = vunpack.c.l.s4 1966171168
    %v107 = vunpack.c.0.s8 %v106
    %v108 = vlaneseq
    %v109 = vshrl.u32 %v108, 7
    %v110 = vsub.s32 %v107, %v109
    %v111 = vrot.slane %v103, %v110
    %v113 = vunpack.c.l.s4 1966171168
    %v114 = vunpack.c.0.s8 %v113
    %v115 = vlaneseq
    %v116 = vshrl.u32 %v115, 7
    %v117 = vsub.s32 %v114, %v116
    %v118 = vrot.slane %v104, %v117
    %v119 = vld [vmem:[#allocation3] sm:$0x3]
    %v122 = vunpack.c.l.s4 1966171168
    %v123 = vunpack.c.0.s8 %v122
    %v124 = vlaneseq
    %v125 = vshrl.u32 %v124, 7
    %v126 = vsub.s32 %v123, %v125
    %v127 = vrot.slane %v119, %v126
    %v128 = vcombine.high %v127, %v127
    %v130 = vunpack.c.l.s4 1966171168
    %v131 = vunpack.c.0.s8 %v130
    %v132 = vlaneseq
    %v133 = vshrl.u32 %v132, 7
    %v134 = vsub.s32 %v131, %v133
    %v135 = vrot.slane %v127, %v134
    %v137 = vunpack.c.l.s4 1966171168
    %v138 = vunpack.c.0.s8 %v137
    %v139 = vlaneseq
    %v140 = vshrl.u32 %v139, 7
    %v141 = vsub.s32 %v138, %v140
    %v142 = vrot.slane %v128, %v141
    %v143 = vld [vmem:[#allocation8] sm:$0xff]
    %v144 = vld [vmem:[#allocation8 + $0x8] sm:$0xff]
    %v145 = vlaneseq
    %v146 = vshrl.u32 %v145, 7
    %v147 = vsub.s32 0, %v146
    %v148 = vrot.slane %v111, %v147
    %v149 = vlaneseq
    %v150 = vshrl.u32 %v149, 7
    %v151 = vsub.s32 0, %v150
    %v152 = vrot.slane %v118, %v151
    %v155 = vmul.f32 %v143, %v148
    %v156 = vmul.f32 %v144, %v152
    %vm157 = vcmask 261120
    %v158 = vsel %vm157, %v155, 0.0
    %159 = vadd.xlane.f32.xlu0 %v158
    %v160 = vpop.xlane.xlu0 %159
    %v161 = vsel %vm157, %v156, 0.0
    %162 = vadd.xlane.f32.xlu0 %v161
    %v163 = vpop.xlane.xlu0 %162
    %v164 = vld [vmem:[#allocation6] sm:$0xff]
    %v165 = vld [vmem:[#allocation6 + $0x8] sm:$0xff]
    %v166 = vlaneseq
    %v167 = vshrl.u32 %v166, 7
    %v168 = vsub.s32 0, %v167
    %v169 = vrot.slane %v135, %v168
    %v170 = vlaneseq
    %v171 = vshrl.u32 %v170, 7
    %v172 = vsub.s32 0, %v171
    %v173 = vrot.slane %v142, %v172
    %v176 = vmul.f32 %v164, %v169
    %v177 = vmul.f32 %v165, %v173
    %v178 = vsel %vm157, %v176, 0.0
    %179 = vadd.xlane.f32.xlu0 %v178
    %v180 = vpop.xlane.xlu0 %179
    %v181 = vsel %vm157, %v177, 0.0
    %182 = vadd.xlane.f32.xlu0 %v181
    %v183 = vpop.xlane.xlu0 %182
    %v184 = vld [vmem:[#allocation11] sm:$0xff]
    %v185 = vld [vmem:[#allocation11 + $0x8] sm:$0xff]
    %v186 = vmul.f32 %v184, %v148
    %v187 = vmul.f32 %v185, %v152
    %v188 = vsel %vm157, %v186, 0.0
    %189 = vadd.xlane.f32.xlu0 %v188
    %v190 = vpop.xlane.xlu0 %189
    %v191 = vsel %vm157, %v187, 0.0
    %192 = vadd.xlane.f32.xlu0 %v191
    %v193 = vpop.xlane.xlu0 %192
    %v194 = vld [vmem:[#allocation9] sm:$0xff]
    %v195 = vld [vmem:[#allocation9 + $0x8] sm:$0xff]
    %v196 = vmul.f32 %v194, %v169
    %v197 = vmul.f32 %v195, %v173
    %v198 = vsel %vm157, %v196, 0.0
    %199 = vadd.xlane.f32.xlu0 %v198
    %v200 = vpop.xlane.xlu0 %199
    %v201 = vsel %vm157, %v197, 0.0
    %202 = vadd.xlane.f32.xlu0 %v201
    %v203 = vpop.xlane.xlu0 %202
    %v206 = vlaneseq
    %v207 = vand.u32 %v206, 127
    %v208 = vlaneseq
    %v209 = vshrl.u32 %v208, 7
    %v210 = vsub.s32 %v207, %v209
    %v211 = vrot.slane %v160, %v210
    %v212 = vlaneseq
    %v213 = vshrl.u32 %v212, 7
    %v214 = vsub.s32 %v207, %v213
    %v215 = vrot.slane %v163, %v214
    %v220 = vlaneseq
    %v221 = vshrl.u32 %v220, 7
    %v222 = vsub.s32 %v207, %v221
    %v223 = vrot.slane %v180, %v222
    %v224 = vlaneseq
    %v225 = vshrl.u32 %v224, 7
    %v226 = vsub.s32 %v207, %v225
    %v227 = vrot.slane %v183, %v226
    %v232 = vlaneseq
    %v233 = vshrl.u32 %v232, 7
    %v234 = vsub.s32 %v207, %v233
    %v235 = vrot.slane %v190, %v234
    %v236 = vlaneseq
    %v237 = vshrl.u32 %v236, 7
    %v238 = vsub.s32 %v207, %v237
    %v239 = vrot.slane %v193, %v238
    %v244 = vlaneseq
    %v245 = vshrl.u32 %v244, 7
    %v246 = vsub.s32 %v207, %v245
    %v247 = vrot.slane %v200, %v246
    %v248 = vlaneseq
    %v249 = vshrl.u32 %v248, 7
    %v250 = vsub.s32 %v207, %v249
    %v251 = vrot.slane %v203, %v250
    %vm254 = vcmask 1040384
    %v255 = vsel %vm254, %v211, %v223
    %v256 = vsel %vm254, %v215, %v227
    %vm257 = vcmask 1041408
    %v258 = vsel %vm257, %v255, %v235
    %v259 = vsel %vm257, %v256, %v239
    %vm260 = vcmask 1042432
    %v261 = vsel %vm260, %v258, %v247
    %v262 = vsel %vm260, %v259, %v251
    %v263 = vstv %s94
    %v264 = vadd.f32 %v261, %v263
    %v265 = vadd.f32 %v262, %v263
    %v268 = vcombine.low %v264, %v265
    %vm270 = vcmask 64512
    %271 = vst.msk [vmem:[#allocation12] sm:$0xff] %vm270, %v268
    // Predicated region
    $region50: #{tpu_custom_call.1} parent=1 // pred_check
      _
    $region51: #{tpu_custom_call.1} parent=1 // pred_check_branch
      %273 = sbr.rel (0) target = $region53
    $region52: #{tpu_custom_call.1} parent=1 // pred_region
      %s275 = ssub.s32 128, 128
      %276 = vsyncadd [#allocation5], %s275
      %s278 = sshll.u32 [#allocation12], 4
      %s279 = int_to_ptr.vmem [resolvable:$true] %s278
      %281 = dma.vmem_to_hbm [thread:$0]  %s279, 128, %s7, [#allocation5]
    $region53: #{tpu_custom_call.1} parent=1 // pred_fallthru
      _
    // Predicated region
    $region54: #{tpu_custom_call.1} parent=1 // pred_check
      _
    $region55: #{tpu_custom_call.1} parent=1 // pred_check_branch
      %283 = sbr.rel (0) target = $region57
    $region56: #{tpu_custom_call.1} parent=1 // pred_region
      %284 = dma.done [#allocation5], 128
    $region57: #{tpu_custom_call.1} parent=1 // pred_fallthru
      _
    %285 = vsyncpa [#allocation4], 1
    %286 = vsyncpa [#allocation7], 1
    %287 = vsyncpa [#allocation10], 1
    %288 = vsyncpa [#allocation5], 1

</llo_original>
